<compile_context>
chip_gen: v5e
topology: v5e:2x2
jax: 0.10.0
libtpu: 0.0.40
codegen_flags: <defaults>
</compile_context>

<pallas_src>
import jax
import jax.numpy as jnp
from jax.experimental import pallas as pl
from jax.experimental.pallas import tpu as pltpu


def _prototypes_dma_copy_kernel(src_hbm_ref, dst_hbm_ref, copy_sem):
    """Copy the whole prototype table HBM -> HBM with a single DMA."""
    cp = pltpu.make_async_copy(src_hbm_ref, dst_hbm_ref, copy_sem)
    cp.start()
    cp.wait()


def _pallas_hbm_copy(x: jax.Array) -> jax.Array:
    """Materialize a fresh copy of `x` via an HBM->HBM DMA Pallas kernel."""
    return pl.pallas_call(
        _prototypes_dma_copy_kernel,
        out_shape=jax.ShapeDtypeStruct(x.shape, x.dtype),
        # Raw HBM refs: no auto-DMA into VMEM, no block sizing, no (8,128)
        # tiling constraints, identical behavior on v5e / v6e / v7x.
        in_specs=[pl.BlockSpec(memory_space=pl.ANY)],
        out_specs=pl.BlockSpec(memory_space=pl.ANY),
        scratch_shapes=[pltpu.SemaphoreType.DMA],
    )(x)


def prototypes_forward(prototypes: jax.Array, prototype_labels: jax.Array):
    """Pallas/JAX equivalent of `_Prototypes.forward()`.

    forward() has no compute, so the fastest correct implementation returns
    both arrays untouched — no kernel launch, no HBM traffic.
    """
    return prototypes, prototype_labels


def prototypes_forward_materialized(prototypes: jax.Array,
                                    prototype_labels: jax.Array):
    """Variant that returns a freshly materialized copy of the prototype
    table (single HBM->HBM DMA).  Labels are still passed through untouched."""
    return _pallas_hbm_copy(prototypes), prototype_labels


if __name__ == "__main__":
    # Deterministic parameter construction (what a concrete subclass'
    # __init__ would register): num_classes=4, prototypes_per_class=2,
    # input_dim=32.
    key = jax.random.PRNGKey(0)
    num_classes = 4
    prototypes_per_class = 2
    input_dim = 32
    num_prototypes = num_classes * prototypes_per_class

    prototypes = jax.random.normal(
        key, (num_prototypes, input_dim), dtype=jnp.float32)
    prototype_labels = jnp.repeat(
        jnp.arange(num_classes, dtype=jnp.int32), prototypes_per_class)

    # prototype_distribution sanity check (mirrors
    # _validate_prototype_distribution; Python-side, not kernel work).
    prototype_distribution = jnp.full((num_classes,), prototypes_per_class,
                                      dtype=jnp.int32)
    assert not bool(jnp.any(prototype_distribution == 0))

    # Default forward path: zero-cost identity (no pallas_call).
    out_protos, out_labels = prototypes_forward(prototypes, prototype_labels)
    jax.block_until_ready((out_protos, out_labels))

    assert out_protos.shape == prototypes.shape
    assert out_protos.dtype == prototypes.dtype
    assert out_labels.shape == prototype_labels.shape
    assert out_labels.dtype == prototype_labels.dtype
    assert bool(jnp.all(out_protos == prototypes))
    assert bool(jnp.all(out_labels == prototype_labels))

    # Materialized-copy path: run the Pallas HBM->HBM DMA kernel once.
    copy_protos, copy_labels = prototypes_forward_materialized(
        prototypes, prototype_labels)
    jax.block_until_ready((copy_protos, copy_labels))

    assert copy_protos.shape == prototypes.shape
    assert copy_protos.dtype == prototypes.dtype
    assert bool(jnp.all(copy_protos == prototypes))
    assert bool(jnp.all(copy_labels == prototype_labels))

    print("KERNEL_OK")
</pallas_src>

<mosaic_0001>
module attributes {stable_mosaic.version = 11 : i64} {
  func.func @_prototypes_dma_copy_kernel(%arg0: memref<8x32xf32, #tpu.memory_space<any>>, %arg1: memref<8x32xf32, #tpu.memory_space<any>>, %arg2: memref<!tpu.dma_semaphore, #tpu.memory_space<semaphore_mem>>) attributes {dimension_semantics = [], scalar_prefetch = 0 : i64, scratch_operands = 1 : i64, tpu.core_type = #tpu.core_type<tc>} {
    tpu.enqueue_dma source(%arg0 : memref<8x32xf32, #tpu.memory_space<any>>) target(%arg1 : memref<8x32xf32, #tpu.memory_space<any>>) target_semaphore(%arg2 : memref<!tpu.dma_semaphore, #tpu.memory_space<semaphore_mem>>)
    tpu.wait_dma2 semaphore(%arg2 : memref<!tpu.dma_semaphore, #tpu.memory_space<semaphore_mem>>) src(%arg0 : memref<8x32xf32, #tpu.memory_space<any>>) dst(%arg1 : memref<8x32xf32, #tpu.memory_space<any>>)
    return
  }
}

</mosaic_0001>

<llo_original>
// kernel: tpu_custom_call.1
$region0: #{tpu_custom_call.1}
  #allocation0 [shape = 'u32[]', space=smem, size = 0x4, offset = 0x4, fixed_abs, tag = 'smem constant byte address 0x4 - core index']
  #allocation1 [shape = 'u32[72,128]{1,0:T(1,128)}', space=vmem, size = 0x9000, scoped, tag = 'internal scratch']
  #allocation2 [shape = 's32[1]{0}', space=sflag, size = 0x4, scoped, tag = 'scratch operand']
  #allocation3 [shape = 's32[]', space=sflag, size = 0x4, offset = 0, fixed_abs, tag = 'sflag constant byte address 0x0 - dummy sync flag']
  #allocation4 [shape = 'u32[0]{0}', space=smem, size = 0, offset = 0, fixed_abs, tag = 'smem constant byte address 0x0 - null']
  %s0 = inlined_call_operand.hbm [shape: f32[8,32], index: 0, kind: input, shape index: {}]
  %s1 = inlined_call_operand.hbm [shape: f32[8,32], index: 1, kind: output, shape index: {}]
  %s2 = sld [smem:[#allocation0]]
  $region2: #{tpu_custom_call.1} parent=0
    _
  %s4 = ssub.s32 1, %s2
  %s5 = scalar_select 0, %s4, %s2
  %s7 = sshll.u32 1, 14
  %s8 = sxor.u32 4294967295, %s7
  %s10 = sshll.u32 %s0, 4
  %s11 = int_to_ptr.hbm [resolvable:$true] %s10
  %s12 = sshll.u32 %s1, 4
  %s13 = int_to_ptr.hbm [resolvable:$true] %s12
  %16 = dma.general %s11, 128, %s13, [#allocation2], [#allocation3], [#allocation4], 0, 0
  %s17 = smul.u32 8, 1
  %s18 = sshll.u32 %s17, 4
  %19 = dma.done [#allocation2], %s18
  %20 = vsyncmov [#allocation2]
  %s21 = vpop.sfrf %20
  %p22 = scmp.eq.s32.totalorder %s21, 0
  %p23 = pneg %p22
  %25 = shalt.err (%p23)

</llo_original>
